<compile_context>
chip_gen: v5e
topology: v5e:2x2
jax: 0.10.0
libtpu: 0.0.40
codegen_flags: <defaults>
</compile_context>

<pallas_src>
import functools

import jax
import jax.numpy as jnp
from jax import lax
from jax.experimental import pallas as pl
from jax.experimental.pallas import tpu as pltpu

LN_EPS = 1e-5  # PyTorch nn.LayerNorm default


def _layernorm_relu(h, gamma, beta):
    # h: (tb, H) f32; gamma/beta: (1, H) f32 (broadcast over rows)
    mu = jnp.mean(h, axis=-1, keepdims=True)
    var = jnp.mean((h - mu) * (h - mu), axis=-1, keepdims=True)  # biased var (torch LN)
    h = (h - mu) * lax.rsqrt(var + LN_EPS)
    return jnp.maximum(h * gamma + beta, 0.0)


def actor_part1_kernel(x_ref, w1_ref, w2_ref, p_ref, o_ref, *, mxu_dtype):
    # Packed params (8, H) f32: row 0=b1, 1=g1, 2=be1, 3=b2, 4=g2, 5=be2, 6/7=pad
    p = p_ref[...]
    b1, g1, be1 = p[0:1, :], p[1:2, :], p[2:3, :]
    b2, g2, be2 = p[3:4, :], p[4:5, :], p[5:6, :]

    # MXU operands in mxu_dtype (bf16 by default), accumulation + LN math in f32.
    x = x_ref[...].astype(mxu_dtype)
    w1 = w1_ref[...].astype(mxu_dtype)
    w2 = w2_ref[...].astype(mxu_dtype)

    # Layer 1: Linear + LayerNorm + ReLU
    h = jnp.dot(x, w1, preferred_element_type=jnp.float32) + b1
    h = _layernorm_relu(h, g1, be1)

    # Layer 2: Linear + LayerNorm + ReLU
    h = jnp.dot(h.astype(mxu_dtype), w2, preferred_element_type=jnp.float32) + b2
    h = _layernorm_relu(h, g2, be2)

    o_ref[...] = h.astype(o_ref.dtype)


def _choose_block_b(B):
    """Large MXU-filling batch tiles; >=2 grid steps when B is big enough so the
    two TensorCores on v7x each take half the batch (no effect on v5e/v6e)."""
    if B <= 512:
        return B                      # single tile; block == full dim is always legal
    half = -(-B // 2)                 # ceil(B / 2)
    half = ((half + 255) // 256) * 256  # align to 256 (multiple of 128 too)
    return min(half, 2048)            # VMEM is a non-issue; cap for pipelining


@functools.partial(jax.jit, static_argnames=("block_b", "mxu_dtype"))
def actor_part1(x, params, *, block_b=None, mxu_dtype=jnp.bfloat16):
    """x: (B, num_inputs). Returns (B, hidden_size)."""
    B, D = x.shape
    w1, b1, g1, be1, w2, b2, g2, be2 = params
    H = w1.shape[1]

    if block_b is None:
        block_b = _choose_block_b(B)
    grid = (pl.cdiv(B, block_b),)

    # Pack the six (1, H) vectors into one padded (8, H) operand (one DMA).
    packed = jnp.concatenate(
        [b1, g1, be1, b2, g2, be2, jnp.zeros((2, H), dtype=b1.dtype)],
        axis=0).astype(jnp.float32)

    kernel = functools.partial(actor_part1_kernel, mxu_dtype=mxu_dtype)

    def row_map(i):    # batch-tiled operands
        return (i, 0)

    def fixed_map(i):  # grid-invariant operands (weights / packed LN params)
        return (0, 0)

    return pl.pallas_call(
        kernel,
        out_shape=jax.ShapeDtypeStruct((B, H), x.dtype),
        grid_spec=pltpu.PrefetchScalarGridSpec(
            num_scalar_prefetch=0,
            grid=grid,
            in_specs=[
                pl.BlockSpec((block_b, D), row_map),   # x tile
                pl.BlockSpec((D, H), fixed_map),       # w1 (in, out)
                pl.BlockSpec((H, H), fixed_map),       # w2 (in, out)
                pl.BlockSpec((8, H), fixed_map),       # packed b1,g1,be1,b2,g2,be2
            ],
            out_specs=pl.BlockSpec((block_b, H), row_map),
        ),
        compiler_params=pltpu.CompilerParams(
            dimension_semantics=("parallel",)),
    )(x, w1, w2, packed)


def init_params(key, num_inputs, hidden_size=128, dtype=jnp.float32):
    """Deterministic init mimicking nn.Linear (uniform +/- 1/sqrt(fan_in)) and
    nn.LayerNorm (gamma=1, beta=0). Linear weights stored transposed (in, out)."""
    k1, k2, k3, k4 = jax.random.split(key, 4)
    bound1 = 1.0 / jnp.sqrt(num_inputs)
    bound2 = 1.0 / jnp.sqrt(hidden_size)
    w1 = jax.random.uniform(k1, (num_inputs, hidden_size), dtype, -bound1, bound1)
    b1 = jax.random.uniform(k2, (1, hidden_size), dtype, -bound1, bound1)
    w2 = jax.random.uniform(k3, (hidden_size, hidden_size), dtype, -bound2, bound2)
    b2 = jax.random.uniform(k4, (1, hidden_size), dtype, -bound2, bound2)
    g1 = jnp.ones((1, hidden_size), dtype)
    be1 = jnp.zeros((1, hidden_size), dtype)
    g2 = jnp.ones((1, hidden_size), dtype)
    be2 = jnp.zeros((1, hidden_size), dtype)
    return (w1, b1, g1, be1, w2, b2, g2, be2)


def _reference(x, params):
    """Pure-JAX (f32) reference of the PyTorch forward pass."""
    w1, b1, g1, be1, w2, b2, g2, be2 = params

    def ln_relu(h, g, b):
        mu = jnp.mean(h, axis=-1, keepdims=True)
        var = jnp.mean((h - mu) ** 2, axis=-1, keepdims=True)
        return jnp.maximum((h - mu) / jnp.sqrt(var + LN_EPS) * g + b, 0.0)

    h = ln_relu(x @ w1 + b1, g1, be1)
    h = ln_relu(h @ w2 + b2, g2, be2)
    return h


if __name__ == "__main__":
    key = jax.random.PRNGKey(0)
    kx, kp = jax.random.split(key)

    batch = 64           # batch_size * nagents (small demo size)
    num_inputs = 32      # obs_shape
    hidden_size = 128

    x = jax.random.normal(kx, (batch, num_inputs), dtype=jnp.float32)
    params = init_params(kp, num_inputs, hidden_size)

    out = jax.block_until_ready(actor_part1(x, params))
    ref = _reference(x, params)

    assert out.shape == (batch, hidden_size)
    # bf16 MXU operands (with f32 accumulation + f32 LayerNorm) deviate slightly
    # from the pure-f32 PyTorch/JAX reference -> loosened tolerance.
    assert jnp.allclose(out, ref, atol=5e-2, rtol=5e-2), "mismatch vs reference"

    print("KERNEL_OK")
</pallas_src>

<mosaic_0001>
module attributes {stable_mosaic.version = 11 : i64} {
  func.func @actor_part1_kernel(%arg0: i32, %arg1: memref<64x32xf32, #tpu.memory_space<vmem>>, %arg2: memref<32x128xf32, #tpu.memory_space<vmem>>, %arg3: memref<128x128xf32, #tpu.memory_space<vmem>>, %arg4: memref<8x128xf32, #tpu.memory_space<vmem>>, %arg5: memref<64x128xf32, #tpu.memory_space<vmem>>) attributes {dimension_semantics = [#tpu.dimension_semantics<parallel>], iteration_bounds = array<i64: 1>, scalar_prefetch = 0 : i64, scratch_operands = 0 : i64, tpu.core_type = #tpu.core_type<tc>, window_params = [{transform_indices = @transform_0, window_bounds = array<i64: 64, 32>}, {pipeline_mode = #tpu.pipeline_mode<synchronous>, transform_indices = @transform_1, window_bounds = array<i64: 32, 128>}, {pipeline_mode = #tpu.pipeline_mode<synchronous>, transform_indices = @transform_2, window_bounds = array<i64: 128, 128>}, {pipeline_mode = #tpu.pipeline_mode<synchronous>, transform_indices = @transform_3, window_bounds = array<i64: 8, 128>}, {transform_indices = @transform_4, window_bounds = array<i64: 64, 128>}]} {
    %c0 = arith.constant 0 : index
    %c0_0 = arith.constant 0 : index
    %0 = vector.load %arg4[%c0, %c0_0] : memref<8x128xf32, #tpu.memory_space<vmem>>, vector<8x128xf32>
    %1 = vector.extract_strided_slice %0 {offsets = [0, 0], sizes = [1, 128], strides = [1, 1]} : vector<8x128xf32> to vector<1x128xf32>
    %2 = vector.extract_strided_slice %0 {offsets = [1, 0], sizes = [1, 128], strides = [1, 1]} : vector<8x128xf32> to vector<1x128xf32>
    %3 = vector.extract_strided_slice %0 {offsets = [2, 0], sizes = [1, 128], strides = [1, 1]} : vector<8x128xf32> to vector<1x128xf32>
    %4 = vector.extract_strided_slice %0 {offsets = [3, 0], sizes = [1, 128], strides = [1, 1]} : vector<8x128xf32> to vector<1x128xf32>
    %5 = vector.extract_strided_slice %0 {offsets = [4, 0], sizes = [1, 128], strides = [1, 1]} : vector<8x128xf32> to vector<1x128xf32>
    %6 = vector.extract_strided_slice %0 {offsets = [5, 0], sizes = [1, 128], strides = [1, 1]} : vector<8x128xf32> to vector<1x128xf32>
    %c0_1 = arith.constant 0 : index
    %c0_2 = arith.constant 0 : index
    %7 = vector.load %arg1[%c0_1, %c0_2] : memref<64x32xf32, #tpu.memory_space<vmem>>, vector<64x32xf32>
    %8 = arith.truncf %7 : vector<64x32xf32> to vector<64x32xbf16>
    %c0_3 = arith.constant 0 : index
    %c0_4 = arith.constant 0 : index
    %9 = vector.load %arg2[%c0_3, %c0_4] : memref<32x128xf32, #tpu.memory_space<vmem>>, vector<32x128xf32>
    %10 = arith.truncf %9 : vector<32x128xf32> to vector<32x128xbf16>
    %c0_5 = arith.constant 0 : index
    %c0_6 = arith.constant 0 : index
    %11 = vector.load %arg3[%c0_5, %c0_6] : memref<128x128xf32, #tpu.memory_space<vmem>>, vector<128x128xf32>
    %12 = arith.truncf %11 : vector<128x128xf32> to vector<128x128xbf16>
    %cst = arith.constant dense<0.000000e+00> : vector<64x128xf32>
    %13 = tpu.matmul %8, %10, %cst {dimension_numbers = #tpu.dot_dimension_numbers<[1], [0], [0], [1], [0, 0, 1, 1], [], []>} : vector<64x32xbf16>, vector<32x128xbf16>, vector<64x128xf32> -> vector<64x128xf32>
    %14 = vector.broadcast %1 : vector<1x128xf32> to vector<64x128xf32>
    %15 = arith.addf %13, %14 : vector<64x128xf32>
    %cst_7 = arith.constant dense<0.000000e+00> : vector<64xf32>
    %16 = vector.multi_reduction <add>, %15, %cst_7 [1] : vector<64x128xf32> to vector<64xf32>
    %17 = vector.shape_cast %16 : vector<64xf32> to vector<64x1xf32>
    %cst_8 = arith.constant 1.280000e+02 : f32
    %18 = vector.broadcast %cst_8 : f32 to vector<64x1xf32>
    %19 = arith.divf %17, %18 : vector<64x1xf32>
    %20 = vector.broadcast %19 : vector<64x1xf32> to vector<64x128xf32>
    %21 = arith.subf %15, %20 : vector<64x128xf32>
    %22 = vector.broadcast %19 : vector<64x1xf32> to vector<64x128xf32>
    %23 = arith.subf %15, %22 : vector<64x128xf32>
    %24 = arith.mulf %21, %23 : vector<64x128xf32>
    %cst_9 = arith.constant dense<0.000000e+00> : vector<64xf32>
    %25 = vector.multi_reduction <add>, %24, %cst_9 [1] : vector<64x128xf32> to vector<64xf32>
    %26 = vector.shape_cast %25 : vector<64xf32> to vector<64x1xf32>
    %cst_10 = arith.constant 1.280000e+02 : f32
    %27 = vector.broadcast %cst_10 : f32 to vector<64x1xf32>
    %28 = arith.divf %26, %27 : vector<64x1xf32>
    %29 = vector.broadcast %19 : vector<64x1xf32> to vector<64x128xf32>
    %30 = arith.subf %15, %29 : vector<64x128xf32>
    %cst_11 = arith.constant 9.99999974E-6 : f32
    %31 = vector.broadcast %cst_11 : f32 to vector<64x1xf32>
    %32 = arith.addf %28, %31 : vector<64x1xf32>
    %33 = math.rsqrt %32 : vector<64x1xf32>
    %34 = vector.broadcast %33 : vector<64x1xf32> to vector<64x128xf32>
    %35 = arith.mulf %30, %34 : vector<64x128xf32>
    %36 = vector.broadcast %2 : vector<1x128xf32> to vector<64x128xf32>
    %37 = arith.mulf %35, %36 : vector<64x128xf32>
    %38 = vector.broadcast %3 : vector<1x128xf32> to vector<64x128xf32>
    %39 = arith.addf %37, %38 : vector<64x128xf32>
    %cst_12 = arith.constant 0.000000e+00 : f32
    %40 = vector.broadcast %cst_12 : f32 to vector<64x128xf32>
    %41 = arith.maximumf %39, %40 : vector<64x128xf32>
    %42 = arith.truncf %41 : vector<64x128xf32> to vector<64x128xbf16>
    %cst_13 = arith.constant dense<0.000000e+00> : vector<64x128xf32>
    %43 = tpu.matmul %42, %12, %cst_13 {dimension_numbers = #tpu.dot_dimension_numbers<[1], [0], [0], [1], [0, 0, 1, 1], [], []>} : vector<64x128xbf16>, vector<128x128xbf16>, vector<64x128xf32> -> vector<64x128xf32>
    %44 = vector.broadcast %4 : vector<1x128xf32> to vector<64x128xf32>
    %45 = arith.addf %43, %44 : vector<64x128xf32>
    %cst_14 = arith.constant dense<0.000000e+00> : vector<64xf32>
    %46 = vector.multi_reduction <add>, %45, %cst_14 [1] : vector<64x128xf32> to vector<64xf32>
    %47 = vector.shape_cast %46 : vector<64xf32> to vector<64x1xf32>
    %cst_15 = arith.constant 1.280000e+02 : f32
    %48 = vector.broadcast %cst_15 : f32 to vector<64x1xf32>
    %49 = arith.divf %47, %48 : vector<64x1xf32>
    %50 = vector.broadcast %49 : vector<64x1xf32> to vector<64x128xf32>
    %51 = arith.subf %45, %50 : vector<64x128xf32>
    %52 = vector.broadcast %49 : vector<64x1xf32> to vector<64x128xf32>
    %53 = arith.subf %45, %52 : vector<64x128xf32>
    %54 = arith.mulf %51, %53 : vector<64x128xf32>
    %cst_16 = arith.constant dense<0.000000e+00> : vector<64xf32>
    %55 = vector.multi_reduction <add>, %54, %cst_16 [1] : vector<64x128xf32> to vector<64xf32>
    %56 = vector.shape_cast %55 : vector<64xf32> to vector<64x1xf32>
    %cst_17 = arith.constant 1.280000e+02 : f32
    %57 = vector.broadcast %cst_17 : f32 to vector<64x1xf32>
    %58 = arith.divf %56, %57 : vector<64x1xf32>
    %59 = vector.broadcast %49 : vector<64x1xf32> to vector<64x128xf32>
    %60 = arith.subf %45, %59 : vector<64x128xf32>
    %cst_18 = arith.constant 9.99999974E-6 : f32
    %61 = vector.broadcast %cst_18 : f32 to vector<64x1xf32>
    %62 = arith.addf %58, %61 : vector<64x1xf32>
    %63 = math.rsqrt %62 : vector<64x1xf32>
    %64 = vector.broadcast %63 : vector<64x1xf32> to vector<64x128xf32>
    %65 = arith.mulf %60, %64 : vector<64x128xf32>
    %66 = vector.broadcast %5 : vector<1x128xf32> to vector<64x128xf32>
    %67 = arith.mulf %65, %66 : vector<64x128xf32>
    %68 = vector.broadcast %6 : vector<1x128xf32> to vector<64x128xf32>
    %69 = arith.addf %67, %68 : vector<64x128xf32>
    %cst_19 = arith.constant 0.000000e+00 : f32
    %70 = vector.broadcast %cst_19 : f32 to vector<64x128xf32>
    %71 = arith.maximumf %69, %70 : vector<64x128xf32>
    %c0_20 = arith.constant 0 : index
    %c0_21 = arith.constant 0 : index
    %72 = vector.load %arg5[%c0_20, %c0_21] : memref<64x128xf32, #tpu.memory_space<vmem>>, vector<64x128xf32>
    tpu.vector_store %arg5[%c0_20, %c0_21], %71 {strides = array<i32>} : memref<64x128xf32, #tpu.memory_space<vmem>>, vector<64x128xf32>,
    return
  }
  func.func @transform_0(%arg0: i32) -> (i32, i32) {
    %c0_i32 = arith.constant 0 : i32
    %c0_i32_0 = arith.constant 0 : i32
    return %arg0, %c0_i32 : i32, i32
  }
  func.func @transform_1(%arg0: i32) -> (i32, i32) {
    %c0_i32 = arith.constant 0 : i32
    %c0_i32_0 = arith.constant 0 : i32
    %c0_i32_1 = arith.constant 0 : i32
    return %c0_i32, %c0_i32_0 : i32, i32
  }
  func.func @transform_2(%arg0: i32) -> (i32, i32) {
    %c0_i32 = arith.constant 0 : i32
    %c0_i32_0 = arith.constant 0 : i32
    %c0_i32_1 = arith.constant 0 : i32
    return %c0_i32, %c0_i32_0 : i32, i32
  }
  func.func @transform_3(%arg0: i32) -> (i32, i32) {
    %c0_i32 = arith.constant 0 : i32
    %c0_i32_0 = arith.constant 0 : i32
    %c0_i32_1 = arith.constant 0 : i32
    return %c0_i32, %c0_i32_0 : i32, i32
  }
  func.func @transform_4(%arg0: i32) -> (i32, i32) {
    %c0_i32 = arith.constant 0 : i32
    %c0_i32_0 = arith.constant 0 : i32
    return %arg0, %c0_i32 : i32, i32
  }
}

</mosaic_0001>

<llo_original>
// kernel: actor_part1.1
$region0: #{actor_part1.1}
  #allocation0 [shape = 'u32[]', space=smem, size = 0x4, offset = 0x4, fixed_abs, tag = 'smem constant byte address 0x4 - core index']
  #allocation1 [shape = 'u32[72,128]{1,0:T(1,128)}', space=vmem, size = 0x9000, scoped, tag = 'internal scratch']
  %s0 = inlined_call_operand.vmem [shape: f32[64,32], index: 0, kind: input, shape index: {}]
  %s1 = inlined_call_operand.vmem [shape: f32[32,128], index: 1, kind: input, shape index: {}]
  %s2 = inlined_call_operand.hbm [shape: f32[128,128], index: 2, kind: input, shape index: {}]
  %s3 = inlined_call_operand.vmem [shape: f32[8,128], index: 3, kind: input, shape index: {}]
  %s4 = inlined_call_operand.hbm [shape: f32[64,128], index: 4, kind: output, shape index: {}]
  %s5 = sld [smem:[#allocation0]]
  $region30: #{actor_part1.1} parent=0
    _
  %s7 = ssub.s32 1, %s5
  %s8 = scalar_select 0, %s7, %s5
  $region1: #{actor_part1.1} parent=0
    #allocation2 [shape = 'u8[65536]{0}', space=vmem, size = 0x10000, scoped, tag = 'input window, operand 2, single buffered']
    #allocation3 [shape = 's32[1]{0}', space=sflag, size = 0x4, scoped, tag = 'scoped memory for actor_part1.1']
    #allocation4 [shape = 's32[1]{0}', space=sflag, size = 0x4, scoped, tag = 'scoped memory for actor_part1.1']
    #allocation5 [shape = 'u8[32768]{0}', space=vmem, size = 0x8000, scoped, tag = 'output window, operand 0, single buffered']
    %9 = vsyncpa [#allocation3], 0
    %10 = vsyncpa [#allocation4], 0
    // Predicated region
    $region2: #{actor_part1.1} parent=1 // pred_check
      _
    $region3: #{actor_part1.1} parent=1 // pred_check_branch
      %12 = sbr.rel (0) target = $region5
    $region4: #{actor_part1.1} parent=1 // pred_region
      _
    $region5: #{actor_part1.1} parent=1 // pred_fallthru
      _
    // Predicated region
    $region6: #{actor_part1.1} parent=1 // pred_check
      _
    $region7: #{actor_part1.1} parent=1 // pred_check_branch
      %14 = sbr.rel (0) target = $region9
    $region8: #{actor_part1.1} parent=1 // pred_region
      _
    $region9: #{actor_part1.1} parent=1 // pred_fallthru
      _
    // Predicated region
    $region10: #{actor_part1.1} parent=1 // pred_check
      _
    $region11: #{actor_part1.1} parent=1 // pred_check_branch
      %16 = sbr.rel (0) target = $region13
    $region12: #{actor_part1.1} parent=1 // pred_region
      %18 = vsyncadd [#allocation3], 0
      %s19 = sshll.u32 %s2, 4
      %s20 = int_to_ptr.hbm [resolvable:$true] %s19
      %s21 = sshll.u32 [#allocation2], 4
      %s22 = int_to_ptr.vmem [resolvable:$true] %s21
      %27 = dma.hbm_to_vmem [thread:$0]  %s20, 2048, %s22, [#allocation3], 128, 128, 8
    $region13: #{actor_part1.1} parent=1 // pred_fallthru
      _
    // Predicated region
    $region14: #{actor_part1.1} parent=1 // pred_check
      _
    $region15: #{actor_part1.1} parent=1 // pred_check_branch
      %29 = sbr.rel (0) target = $region17
    $region16: #{actor_part1.1} parent=1 // pred_region
      _
    $region17: #{actor_part1.1} parent=1 // pred_fallthru
      _
    // Predicated region
    $region18: #{actor_part1.1} parent=1 // pred_check
      _
    $region19: #{actor_part1.1} parent=1 // pred_check_branch
      %31 = sbr.rel (0) target = $region21
    $region20: #{actor_part1.1} parent=1 // pred_region
      %33 = dma.done [#allocation3], 2048
    $region21: #{actor_part1.1} parent=1 // pred_fallthru
      _
    %v35 = vld [vmem:[%s3] sm:$0xff]
    %v36 = vld [vmem:[%s0] sm:$0xff]
    %v37 = vld [vmem:[%s0 + $0x8] sm:$0xff]
    %v38 = vld [vmem:[%s0 + $0x10] sm:$0xff]
    %v39 = vld [vmem:[%s0 + $0x18] sm:$0xff]
    %v40 = vld [vmem:[%s0 + $0x20] sm:$0xff]
    %v41 = vld [vmem:[%s0 + $0x28] sm:$0xff]
    %v42 = vld [vmem:[%s0 + $0x30] sm:$0xff]
    %v43 = vld [vmem:[%s0 + $0x38] sm:$0xff]
    %v44 = vpack.c.bf16 %v37, %v36
    %v45 = vpack.c.bf16 %v39, %v38
    %v46 = vpack.c.bf16 %v41, %v40
    %v47 = vpack.c.bf16 %v43, %v42
    %v48 = vld [vmem:[%s1] sm:$0xff]
    %v49 = vld [vmem:[%s1 + $0x8] sm:$0xff]
    %v50 = vld [vmem:[%s1 + $0x10] sm:$0xff]
    %v51 = vld [vmem:[%s1 + $0x18] sm:$0xff]
    %v52 = vpack.c.bf16 %v49, %v48
    %v53 = vpack.c.bf16 %v51, %v50
    %v54 = vld [vmem:[#allocation2] sm:$0xff]
    %v55 = vld [vmem:[#allocation2 + $0x8] sm:$0xff]
    %v56 = vld [vmem:[#allocation2 + $0x10] sm:$0xff]
    %v57 = vld [vmem:[#allocation2 + $0x18] sm:$0xff]
    %v58 = vld [vmem:[#allocation2 + $0x20] sm:$0xff]
    %v59 = vld [vmem:[#allocation2 + $0x28] sm:$0xff]
    %v60 = vld [vmem:[#allocation2 + $0x30] sm:$0xff]
    %v61 = vld [vmem:[#allocation2 + $0x38] sm:$0xff]
    %v62 = vld [vmem:[#allocation2 + $0x40] sm:$0xff]
    %v63 = vld [vmem:[#allocation2 + $0x48] sm:$0xff]
    %v64 = vld [vmem:[#allocation2 + $0x50] sm:$0xff]
    %v65 = vld [vmem:[#allocation2 + $0x58] sm:$0xff]
    %v66 = vld [vmem:[#allocation2 + $0x60] sm:$0xff]
    %v67 = vld [vmem:[#allocation2 + $0x68] sm:$0xff]
    %v68 = vld [vmem:[#allocation2 + $0x70] sm:$0xff]
    %v69 = vld [vmem:[#allocation2 + $0x78] sm:$0xff]
    %v70 = vpack.c.bf16 %v55, %v54
    %v71 = vpack.c.bf16 %v57, %v56
    %v72 = vpack.c.bf16 %v59, %v58
    %v73 = vpack.c.bf16 %v61, %v60
    %v74 = vpack.c.bf16 %v63, %v62
    %v75 = vpack.c.bf16 %v65, %v64
    %v76 = vpack.c.bf16 %v67, %v66
    %v77 = vpack.c.bf16 %v69, %v68
    %v78 = vperm.slane %v35, 0
    %vm79 = vcmask 261120
    %v81 = vsel %vm79, %v44, 0
    %v84 = vsel %vm79, %v45, 0
    %v87 = vsel %vm79, %v46, 0
    %v90 = vsel %vm79, %v47, 0
    %92 = vmatpush.bf16.msra.mxu0 0
    %93 = vmatpush.bf16.msra.mxu0 0
    %94 = vmatpush.bf16.msra.mxu0 0
    %95 = vmatpush.bf16.msra.mxu0 0
    %96 = vmatpush.bf16.msra.mxu0 0
    %97 = vmatpush.bf16.msra.mxu0 0
    %98 = vmatpush.bf16.msra.mxu0 %v53
    %99 = vmatpush.bf16.msra.mxu0 %v52
    %100 = vmatmul.bf16.gmra.mxu0 %v81
    %v101 = vpop.f32.mrf.mxu0
    %v102 = vadd.f32 %v78, %v101
    %v103 = vpop.f32.mrf.mxu0
    %v104 = vadd.f32 %v78, %v103
    %105 = vmatmul.bf16.gmra.mxu0 %v84
    %v106 = vpop.f32.mrf.mxu0
    %v107 = vadd.f32 %v78, %v106
    %v108 = vpop.f32.mrf.mxu0
    %v109 = vadd.f32 %v78, %v108
    %110 = vmatmul.bf16.gmra.mxu0 %v87
    %v111 = vpop.f32.mrf.mxu0
    %v112 = vadd.f32 %v78, %v111
    %v113 = vpop.f32.mrf.mxu0
    %v114 = vadd.f32 %v78, %v113
    %115 = vmatmul.bf16.gmra.mxu0 %v90
    %v116 = vpop.f32.mrf.mxu0
    %v117 = vadd.f32 %v78, %v116
    %v118 = vpop.f32.mrf.mxu0
    %v119 = vadd.f32 %v78, %v118
    %120 = vdwg.mxu0
    %121 = vadd.xlane.f32.xlu0 %v102
    %v122 = vpop.xlane.xlu0 %121
    %123 = vadd.xlane.f32.xlu0 %v104
    %v124 = vpop.xlane.xlu0 %123
    %125 = vadd.xlane.f32.xlu0 %v107
    %v126 = vpop.xlane.xlu0 %125
    %127 = vadd.xlane.f32.xlu0 %v109
    %v128 = vpop.xlane.xlu0 %127
    %129 = vadd.xlane.f32.xlu0 %v112
    %v130 = vpop.xlane.xlu0 %129
    %131 = vadd.xlane.f32.xlu0 %v114
    %v132 = vpop.xlane.xlu0 %131
    %133 = vadd.xlane.f32.xlu0 %v117
    %v134 = vpop.xlane.xlu0 %133
    %135 = vadd.xlane.f32.xlu0 %v119
    %v136 = vpop.xlane.xlu0 %135
    %v137 = vrcp.pop 128.0
    %v138 = vmul.f32 128.0, %v137
    %v139 = vsub.f32 1.0, %v138
    %v140 = vmul.f32 %v137, %v139
    %v141 = vadd.f32 %v137, %v140
    %vm142 = vweird.f32 %v137
    %v143 = vsel %vm142, %v137, %v141
    %v144 = vmul.f32 %v122, %v143
    %v145 = vmul.f32 %v124, %v143
    %v146 = vmul.f32 %v126, %v143
    %v147 = vmul.f32 %v128, %v143
    %v148 = vmul.f32 %v130, %v143
    %v149 = vmul.f32 %v132, %v143
    %v150 = vmul.f32 %v134, %v143
    %v151 = vmul.f32 %v136, %v143
    %v152 = vsub.f32 %v102, %v144
    %v153 = vsub.f32 %v104, %v145
    %v154 = vsub.f32 %v107, %v146
    %v155 = vsub.f32 %v109, %v147
    %v156 = vsub.f32 %v112, %v148
    %v157 = vsub.f32 %v114, %v149
    %v158 = vsub.f32 %v117, %v150
    %v159 = vsub.f32 %v119, %v151
    %v160 = vmul.f32 %v152, %v152
    %v161 = vmul.f32 %v153, %v153
    %v162 = vmul.f32 %v154, %v154
    %v163 = vmul.f32 %v155, %v155
    %v164 = vmul.f32 %v156, %v156
    %v165 = vmul.f32 %v157, %v157
    %v166 = vmul.f32 %v158, %v158
    %v167 = vmul.f32 %v159, %v159
    %168 = vadd.xlane.f32.xlu0 %v160
    %v169 = vpop.xlane.xlu0 %168
    %170 = vadd.xlane.f32.xlu0 %v161
    %v171 = vpop.xlane.xlu0 %170
    %172 = vadd.xlane.f32.xlu0 %v162
    %v173 = vpop.xlane.xlu0 %172
    %174 = vadd.xlane.f32.xlu0 %v163
    %v175 = vpop.xlane.xlu0 %174
    %176 = vadd.xlane.f32.xlu0 %v164
    %v177 = vpop.xlane.xlu0 %176
    %178 = vadd.xlane.f32.xlu0 %v165
    %v179 = vpop.xlane.xlu0 %178
    %180 = vadd.xlane.f32.xlu0 %v166
    %v181 = vpop.xlane.xlu0 %180
    %182 = vadd.xlane.f32.xlu0 %v167
    %v183 = vpop.xlane.xlu0 %182
    %v184 = vmul.f32 %v169, %v143
    %v185 = vmul.f32 %v171, %v143
    %v186 = vmul.f32 %v173, %v143
    %v187 = vmul.f32 %v175, %v143
    %v188 = vmul.f32 %v177, %v143
    %v189 = vmul.f32 %v179, %v143
    %v190 = vmul.f32 %v181, %v143
    %v191 = vmul.f32 %v183, %v143
    %v192 = vadd.f32 %v184, 1e-05
    %v193 = vadd.f32 %v185, 1e-05
    %v194 = vadd.f32 %v186, 1e-05
    %v195 = vadd.f32 %v187, 1e-05
    %v196 = vadd.f32 %v188, 1e-05
    %v197 = vadd.f32 %v189, 1e-05
    %v198 = vadd.f32 %v190, 1e-05
    %v199 = vadd.f32 %v191, 1e-05
    %v200 = vrsqrt.pop %v192
    %v201 = vmul.f32 %v200, %v192
    %v202 = vmul.f32 %v201, %v200
    %v203 = vmul.f32 0.5, %v202
    %v204 = vsub.f32 1.5, %v203
    %v205 = vmul.f32 %v200, %v204
    %vm206 = vweird.f32 %v192
    %vm207 = vweird.f32 %v200
    %vm208 = vmor %vm206, %vm207
    %v209 = vsel %vm208, %v200, %v205
    %v210 = vrsqrt.pop %v193
    %v211 = vmul.f32 %v210, %v193
    %v212 = vmul.f32 %v211, %v210
    %v213 = vmul.f32 0.5, %v212
    %v214 = vsub.f32 1.5, %v213
    %v215 = vmul.f32 %v210, %v214
    %vm216 = vweird.f32 %v193
    %vm217 = vweird.f32 %v210
    %vm218 = vmor %vm216, %vm217
    %v219 = vsel %vm218, %v210, %v215
    %v220 = vrsqrt.pop %v194
    %v221 = vmul.f32 %v220, %v194
    %v222 = vmul.f32 %v221, %v220
    %v223 = vmul.f32 0.5, %v222
    %v224 = vsub.f32 1.5, %v223
    %v225 = vmul.f32 %v220, %v224
    %vm226 = vweird.f32 %v194
    %vm227 = vweird.f32 %v220
    %vm228 = vmor %vm226, %vm227
    %v229 = vsel %vm228, %v220, %v225
    %v230 = vrsqrt.pop %v195
    %v231 = vmul.f32 %v230, %v195
    %v232 = vmul.f32 %v231, %v230
    %v233 = vmul.f32 0.5, %v232
    %v234 = vsub.f32 1.5, %v233
    %v235 = vmul.f32 %v230, %v234
    %vm236 = vweird.f32 %v195
    %vm237 = vweird.f32 %v230
    %vm238 = vmor %vm236, %vm237
    %v239 = vsel %vm238, %v230, %v235
    %v240 = vrsqrt.pop %v196
    %v241 = vmul.f32 %v240, %v196
    %v242 = vmul.f32 %v241, %v240
    %v243 = vmul.f32 0.5, %v242
    %v244 = vsub.f32 1.5, %v243
    %v245 = vmul.f32 %v240, %v244
    %vm246 = vweird.f32 %v196
    %vm247 = vweird.f32 %v240
    %vm248 = vmor %vm246, %vm247
    %v249 = vsel %vm248, %v240, %v245
    %v250 = vrsqrt.pop %v197
    %v251 = vmul.f32 %v250, %v197
    %v252 = vmul.f32 %v251, %v250
    %v253 = vmul.f32 0.5, %v252
    %v254 = vsub.f32 1.5, %v253
    %v255 = vmul.f32 %v250, %v254
    %vm256 = vweird.f32 %v197
    %vm257 = vweird.f32 %v250
    %vm258 = vmor %vm256, %vm257
    %v259 = vsel %vm258, %v250, %v255
    %v260 = vrsqrt.pop %v198
    %v261 = vmul.f32 %v260, %v198
    %v262 = vmul.f32 %v261, %v260
    %v263 = vmul.f32 0.5, %v262
    %v264 = vsub.f32 1.5, %v263
    %v265 = vmul.f32 %v260, %v264
    %vm266 = vweird.f32 %v198
    %vm267 = vweird.f32 %v260
    %vm268 = vmor %vm266, %vm267
    %v269 = vsel %vm268, %v260, %v265
    %v270 = vrsqrt.pop %v199
    %v271 = vmul.f32 %v270, %v199
    %v272 = vmul.f32 %v271, %v270
    %v273 = vmul.f32 0.5, %v272
    %v274 = vsub.f32 1.5, %v273
    %v275 = vmul.f32 %v270, %v274
    %vm276 = vweird.f32 %v199
    %vm277 = vweird.f32 %v270
    %vm278 = vmor %vm276, %vm277
    %v279 = vsel %vm278, %v270, %v275
    %v280 = vmul.f32 %v152, %v209
    %v281 = vmul.f32 %v153, %v219
    %v282 = vmul.f32 %v154, %v229
    %v283 = vmul.f32 %v155, %v239
    %v284 = vmul.f32 %v156, %v249
    %v285 = vmul.f32 %v157, %v259
    %v286 = vmul.f32 %v158, %v269
    %v287 = vmul.f32 %v159, %v279
    %v288 = vperm.slane %v35, 1
    %v289 = vmul.f32 %v280, %v288
    %v290 = vmul.f32 %v281, %v288
    %v291 = vmul.f32 %v282, %v288
    %v292 = vmul.f32 %v283, %v288
    %v293 = vmul.f32 %v284, %v288
    %v294 = vmul.f32 %v285, %v288
    %v295 = vmul.f32 %v286, %v288
    %v296 = vmul.f32 %v287, %v288
    %v297 = vperm.slane %v35, 2
    %v298 = vadd.f32 %v289, %v297
    %v299 = vadd.f32 %v290, %v297
    %v300 = vadd.f32 %v291, %v297
    %v301 = vadd.f32 %v292, %v297
    %v302 = vadd.f32 %v293, %v297
    %v303 = vadd.f32 %v294, %v297
    %v304 = vadd.f32 %v295, %v297
    %v305 = vadd.f32 %v296, %v297
    %v306 = vmax.f32 %v298, 0.0
    %v307 = vmax.f32 %v299, 0.0
    %v308 = vmax.f32 %v300, 0.0
    %v309 = vmax.f32 %v301, 0.0
    %v310 = vmax.f32 %v302, 0.0
    %v311 = vmax.f32 %v303, 0.0
    %v312 = vmax.f32 %v304, 0.0
    %v313 = vmax.f32 %v305, 0.0
    %v314 = vpack.c.bf16 %v307, %v306
    %v315 = vpack.c.bf16 %v309, %v308
    %v316 = vpack.c.bf16 %v311, %v310
    %v317 = vpack.c.bf16 %v313, %v312
    %v318 = vperm.slane %v35, 3
    %319 = vmatpush.bf16.msra.mxu0 %v77
    %320 = vmatpush.bf16.msra.mxu0 %v76
    %321 = vmatpush.bf16.msra.mxu0 %v75
    %322 = vmatpush.bf16.msra.mxu0 %v74
    %323 = vmatpush.bf16.msra.mxu0 %v73
    %324 = vmatpush.bf16.msra.mxu0 %v72
    %325 = vmatpush.bf16.msra.mxu0 %v71
    %326 = vmatpush.bf16.msra.mxu0 %v70
    %327 = vmatmul.bf16.gmra.mxu0 %v314
    %v328 = vpop.f32.mrf.mxu0
    %v329 = vadd.f32 %v318, %v328
    %v330 = vpop.f32.mrf.mxu0
    %v331 = vadd.f32 %v318, %v330
    %332 = vmatmul.bf16.gmra.mxu0 %v315
    %v333 = vpop.f32.mrf.mxu0
    %v334 = vadd.f32 %v318, %v333
    %v335 = vpop.f32.mrf.mxu0
    %v336 = vadd.f32 %v318, %v335
    %337 = vmatmul.bf16.gmra.mxu0 %v316
    %v338 = vpop.f32.mrf.mxu0
    %v339 = vadd.f32 %v318, %v338
    %v340 = vpop.f32.mrf.mxu0
    %v341 = vadd.f32 %v318, %v340
    %342 = vmatmul.bf16.gmra.mxu0 %v317
    %v343 = vpop.f32.mrf.mxu0
    %v344 = vadd.f32 %v318, %v343
    %v345 = vpop.f32.mrf.mxu0
    %v346 = vadd.f32 %v318, %v345
    %347 = vdwg.mxu0
    %348 = vadd.xlane.f32.xlu0 %v329
    %v349 = vpop.xlane.xlu0 %348
    %350 = vadd.xlane.f32.xlu0 %v331
    %v351 = vpop.xlane.xlu0 %350
    %352 = vadd.xlane.f32.xlu0 %v334
    %v353 = vpop.xlane.xlu0 %352
    %354 = vadd.xlane.f32.xlu0 %v336
    %v355 = vpop.xlane.xlu0 %354
    %356 = vadd.xlane.f32.xlu0 %v339
    %v357 = vpop.xlane.xlu0 %356
    %358 = vadd.xlane.f32.xlu0 %v341
    %v359 = vpop.xlane.xlu0 %358
    %360 = vadd.xlane.f32.xlu0 %v344
    %v361 = vpop.xlane.xlu0 %360
    %362 = vadd.xlane.f32.xlu0 %v346
    %v363 = vpop.xlane.xlu0 %362
    %v364 = vmul.f32 %v349, %v143
    %v365 = vmul.f32 %v351, %v143
    %v366 = vmul.f32 %v353, %v143
    %v367 = vmul.f32 %v355, %v143
    %v368 = vmul.f32 %v357, %v143
    %v369 = vmul.f32 %v359, %v143
    %v370 = vmul.f32 %v361, %v143
    %v371 = vmul.f32 %v363, %v143
    %v372 = vsub.f32 %v329, %v364
    %v373 = vsub.f32 %v331, %v365
    %v374 = vsub.f32 %v334, %v366
    %v375 = vsub.f32 %v336, %v367
    %v376 = vsub.f32 %v339, %v368
    %v377 = vsub.f32 %v341, %v369
    %v378 = vsub.f32 %v344, %v370
    %v379 = vsub.f32 %v346, %v371
    %v380 = vmul.f32 %v372, %v372
    %v381 = vmul.f32 %v373, %v373
    %v382 = vmul.f32 %v374, %v374
    %v383 = vmul.f32 %v375, %v375
    %v384 = vmul.f32 %v376, %v376
    %v385 = vmul.f32 %v377, %v377
    %v386 = vmul.f32 %v378, %v378
    %v387 = vmul.f32 %v379, %v379
    %388 = vadd.xlane.f32.xlu0 %v380
    %v389 = vpop.xlane.xlu0 %388
    %390 = vadd.xlane.f32.xlu0 %v381
    %v391 = vpop.xlane.xlu0 %390
    %392 = vadd.xlane.f32.xlu0 %v382
    %v393 = vpop.xlane.xlu0 %392
    %394 = vadd.xlane.f32.xlu0 %v383
    %v395 = vpop.xlane.xlu0 %394
    %396 = vadd.xlane.f32.xlu0 %v384
    %v397 = vpop.xlane.xlu0 %396
    %398 = vadd.xlane.f32.xlu0 %v385
    %v399 = vpop.xlane.xlu0 %398
    %400 = vadd.xlane.f32.xlu0 %v386
    %v401 = vpop.xlane.xlu0 %400
    %402 = vadd.xlane.f32.xlu0 %v387
    %v403 = vpop.xlane.xlu0 %402
    %v404 = vmul.f32 %v389, %v143
    %v405 = vmul.f32 %v391, %v143
    %v406 = vmul.f32 %v393, %v143
    %v407 = vmul.f32 %v395, %v143
    %v408 = vmul.f32 %v397, %v143
    %v409 = vmul.f32 %v399, %v143
    %v410 = vmul.f32 %v401, %v143
    %v411 = vmul.f32 %v403, %v143
    %v412 = vadd.f32 %v404, 1e-05
    %v413 = vadd.f32 %v405, 1e-05
    %v414 = vadd.f32 %v406, 1e-05
    %v415 = vadd.f32 %v407, 1e-05
    %v416 = vadd.f32 %v408, 1e-05
    %v417 = vadd.f32 %v409, 1e-05
    %v418 = vadd.f32 %v410, 1e-05
    %v419 = vadd.f32 %v411, 1e-05
    %v420 = vrsqrt.pop %v412
    %v421 = vmul.f32 %v420, %v412
    %v422 = vmul.f32 %v421, %v420
    %v423 = vmul.f32 0.5, %v422
    %v424 = vsub.f32 1.5, %v423
    %v425 = vmul.f32 %v420, %v424
    %vm426 = vweird.f32 %v412
    %vm427 = vweird.f32 %v420
    %vm428 = vmor %vm426, %vm427
    %v429 = vsel %vm428, %v420, %v425
    %v430 = vrsqrt.pop %v413
    %v431 = vmul.f32 %v430, %v413
    %v432 = vmul.f32 %v431, %v430
    %v433 = vmul.f32 0.5, %v432
    %v434 = vsub.f32 1.5, %v433
    %v435 = vmul.f32 %v430, %v434
    %vm436 = vweird.f32 %v413
    %vm437 = vweird.f32 %v430
    %vm438 = vmor %vm436, %vm437
    %v439 = vsel %vm438, %v430, %v435
    %v440 = vrsqrt.pop %v414
    %v441 = vmul.f32 %v440, %v414
    %v442 = vmul.f32 %v441, %v440
    %v443 = vmul.f32 0.5, %v442
    %v444 = vsub.f32 1.5, %v443
    %v445 = vmul.f32 %v440, %v444
    %vm446 = vweird.f32 %v414
    %vm447 = vweird.f32 %v440
    %vm448 = vmor %vm446, %vm447
    %v449 = vsel %vm448, %v440, %v445
    %v450 = vrsqrt.pop %v415
    %v451 = vmul.f32 %v450, %v415
    %v452 = vmul.f32 %v451, %v450
    %v453 = vmul.f32 0.5, %v452
    %v454 = vsub.f32 1.5, %v453
    %v455 = vmul.f32 %v450, %v454
    %vm456 = vweird.f32 %v415
    %vm457 = vweird.f32 %v450
    %vm458 = vmor %vm456, %vm457
    %v459 = vsel %vm458, %v450, %v455
    %v460 = vrsqrt.pop %v416
    %v461 = vmul.f32 %v460, %v416
    %v462 = vmul.f32 %v461, %v460
    %v463 = vmul.f32 0.5, %v462
    %v464 = vsub.f32 1.5, %v463
    %v465 = vmul.f32 %v460, %v464
    %vm466 = vweird.f32 %v416
    %vm467 = vweird.f32 %v460
    %vm468 = vmor %vm466, %vm467
    %v469 = vsel %vm468, %v460, %v465
    %v470 = vrsqrt.pop %v417
    %v471 = vmul.f32 %v470, %v417
    %v472 = vmul.f32 %v471, %v470
    %v473 = vmul.f32 0.5, %v472
    %v474 = vsub.f32 1.5, %v473
    %v475 = vmul.f32 %v470, %v474
    %vm476 = vweird.f32 %v417
    %vm477 = vweird.f32 %v470
    %vm478 = vmor %vm476, %vm477
    %v479 = vsel %vm478, %v470, %v475
    %v480 = vrsqrt.pop %v418
    %v481 = vmul.f32 %v480, %v418
    %v482 = vmul.f32 %v481, %v480
    %v483 = vmul.f32 0.5, %v482
    %v484 = vsub.f32 1.5, %v483
    %v485 = vmul.f32 %v480, %v484
    %vm486 = vweird.f32 %v418
    %vm487 = vweird.f32 %v480
    %vm488 = vmor %vm486, %vm487
    %v489 = vsel %vm488, %v480, %v485
    %v490 = vrsqrt.pop %v419
    %v491 = vmul.f32 %v490, %v419
    %v492 = vmul.f32 %v491, %v490
    %v493 = vmul.f32 0.5, %v492
    %v494 = vsub.f32 1.5, %v493
    %v495 = vmul.f32 %v490, %v494
    %vm496 = vweird.f32 %v419
    %vm497 = vweird.f32 %v490
    %vm498 = vmor %vm496, %vm497
    %v499 = vsel %vm498, %v490, %v495
    %v500 = vmul.f32 %v372, %v429
    %v501 = vmul.f32 %v373, %v439
    %v502 = vmul.f32 %v374, %v449
    %v503 = vmul.f32 %v375, %v459
    %v504 = vmul.f32 %v376, %v469
    %v505 = vmul.f32 %v377, %v479
    %v506 = vmul.f32 %v378, %v489
    %v507 = vmul.f32 %v379, %v499
    %v508 = vperm.slane %v35, 4
    %v509 = vmul.f32 %v500, %v508
    %v510 = vmul.f32 %v501, %v508
    %v511 = vmul.f32 %v502, %v508
    %v512 = vmul.f32 %v503, %v508
    %v513 = vmul.f32 %v504, %v508
    %v514 = vmul.f32 %v505, %v508
    %v515 = vmul.f32 %v506, %v508
    %v516 = vmul.f32 %v507, %v508
    %v517 = vperm.slane %v35, 5
    %v518 = vadd.f32 %v509, %v517
    %v519 = vadd.f32 %v510, %v517
    %v520 = vadd.f32 %v511, %v517
    %v521 = vadd.f32 %v512, %v517
    %v522 = vadd.f32 %v513, %v517
    %v523 = vadd.f32 %v514, %v517
    %v524 = vadd.f32 %v515, %v517
    %v525 = vadd.f32 %v516, %v517
    %v526 = vmax.f32 %v518, 0.0
    %v527 = vmax.f32 %v519, 0.0
    %v528 = vmax.f32 %v520, 0.0
    %v529 = vmax.f32 %v521, 0.0
    %v530 = vmax.f32 %v522, 0.0
    %v531 = vmax.f32 %v523, 0.0
    %v532 = vmax.f32 %v524, 0.0
    %v533 = vmax.f32 %v525, 0.0
    %534 = vst [vmem:[#allocation5] sm:$0xff] %v526
    %535 = vst [vmem:[#allocation5 + $0x8] sm:$0xff] %v527
    %536 = vst [vmem:[#allocation5 + $0x10] sm:$0xff] %v528
    %537 = vst [vmem:[#allocation5 + $0x18] sm:$0xff] %v529
    %538 = vst [vmem:[#allocation5 + $0x20] sm:$0xff] %v530
    %539 = vst [vmem:[#allocation5 + $0x28] sm:$0xff] %v531
    %540 = vst [vmem:[#allocation5 + $0x30] sm:$0xff] %v532
    %541 = vst [vmem:[#allocation5 + $0x38] sm:$0xff] %v533
    // Predicated region
    $region22: #{actor_part1.1} parent=1 // pred_check
      _
    $region23: #{actor_part1.1} parent=1 // pred_check_branch
      %543 = sbr.rel (0) target = $region25
    $region24: #{actor_part1.1} parent=1 // pred_region
      %545 = vsyncadd [#allocation4], 0
      %s546 = sshll.u32 [#allocation5], 4
      %s547 = int_to_ptr.vmem [resolvable:$true] %s546
      %s548 = sshll.u32 %s4, 4
      %s549 = int_to_ptr.hbm [resolvable:$true] %s548
      %554 = dma.vmem_to_hbm [thread:$0]  %s547, 1024, %s549, [#allocation4], 128, 128, 8
    $region25: #{actor_part1.1} parent=1 // pred_fallthru
      _
    // Predicated region
    $region26: #{actor_part1.1} parent=1 // pred_check
      _
    $region27: #{actor_part1.1} parent=1 // pred_check_branch
      %556 = sbr.rel (0) target = $region29
    $region28: #{actor_part1.1} parent=1 // pred_region
      %558 = dma.done [#allocation4], 1024
    $region29: #{actor_part1.1} parent=1 // pred_fallthru
      _
    %559 = vsyncpa [#allocation3], 1
    %560 = vsyncpa [#allocation4], 1

</llo_original>
